<compile_context>
chip_gen: v7x
topology: tpu7x:2x2x1
jax: 0.10.0
libtpu: 0.0.40
codegen_flags: <defaults>
</compile_context>

<pallas_src>
import math

import jax
import jax.numpy as jnp
from jax import lax
from jax.experimental import pallas as pl
from jax.experimental.pallas import tpu as pltpu

_LOG_SQRT_2PI = 0.5 * math.log(2.0 * math.pi)
_MINOR_MINOR = (((1,), (1,)), ((), ()))   # contract both operands' last dims (A @ B.T)


def _softplus(x):
    # Numerically stable softplus matching F.softplus (threshold=20 -> identity).
    return jnp.where(x > 20.0, x, jnp.log1p(jnp.exp(jnp.minimum(x, 20.0))))


def _make_actor_kernel(action_dim: int, action_range: float, sample: bool):
    A = action_dim

    def actor_kernel(x_ref, e_ref, w1_ref, b1_ref, w2_ref, b2_ref,
                     wh_ref, bh_ref, out_ref):
        # x_ref: [tb, S] batch-major (streamed straight from HBM, untransposed).
        # The fc1 matmul contracts over S on the minor dim of BOTH operands, so
        # the MXU performs the batch transpose for free; every activation from
        # here on is lane-dense [features, batch_tile] (batch on the 128 lanes).
        h1 = lax.dot_general(w1_ref[...], x_ref[...], _MINOR_MINOR,
                             preferred_element_type=jnp.float32)      # [16, tb]
        h1 = jnp.maximum(h1 + b1_ref[...], 0.0)

        h2 = jnp.dot(w2_ref[...], h1, preferred_element_type=jnp.float32)
        h2 = jnp.maximum(h2 + b2_ref[...], 0.0)                       # [16, tb]

        # Fused mu|sigma head: one MXU matmul, then static sublane slices.
        y = jnp.dot(wh_ref[...], h2, preferred_element_type=jnp.float32)
        y = y + bh_ref[...]                                           # [2A, tb]
        mu = 2.0 * jnp.tanh(y[:A, :])                                 # [A,  tb]
        sigma = _softplus(y[A:, :])                                   # [A,  tb]

        # e_ref is the streamed [tb, A] eps (sample path) or caller-supplied
        # action (evaluate path).  Flip it to [A, tb] on the MXU with a tiny
        # identity matrix instead of a wrapper-side transpose copy.
        rows = lax.broadcasted_iota(jnp.int32, (A, A), 0)
        cols = lax.broadcasted_iota(jnp.int32, (A, A), 1)
        eye = (rows == cols).astype(jnp.float32)
        eT = lax.dot_general(eye, e_ref[...], _MINOR_MINOR,
                             preferred_element_type=jnp.float32)      # [A, tb]

        if sample:
            raw = mu + sigma * eT       # reparameterized Normal(mu, sigma) draw
        else:
            raw = eT                    # caller-supplied action
        action = jnp.clip(raw, -action_range, action_range)

        # Normal log_prob of the clamped action + entropy (matches PyTorch).
        # NOTE: exact divide (no approx reciprocal) -- free accuracy on a
        # memory/overhead-bound kernel.
        log_sigma = jnp.log(sigma)
        z = (action - mu) / sigma
        log_prob = -0.5 * z * z - log_sigma - _LOG_SQRT_2PI
        entropy = 0.5 + _LOG_SQRT_2PI + log_sigma

        # One full-block, lane-dense store of the packed [3A, tb] slab.
        out_ref[...] = jnp.concatenate([action, log_prob, entropy], axis=0)

    return actor_kernel


def a2c_actor_cont_packed(state, params, action_range, *, eps=None, action=None,
                          tile_b=16384, input_buffers=None):
    """A2CActorCont forward; returns the packed lane-dense [3A, B] slab.

    Rows [0:A] = action, [A:2A] = log_prob, [2A:3A] = entropy.  Pass exactly
    one of eps= (sample path, standard-normal noise [B, A]) or action=
    (evaluate path, caller-supplied action [B, A]).  Consumers should take the
    slab packed (or fuse their own slice/transpose); see a2c_actor_cont() for
    the module-shaped compatibility wrapper.
    """
    if (eps is None) == (action is None):
        raise ValueError("pass exactly one of eps= (sample) or action= (evaluate)")
    sample = action is None
    e = eps if sample else action

    B, S = state.shape
    A = e.shape[1]
    H = params["w1"].shape[1]            # hidden width (16 in the module)

    # Batch tile: big enough to amortize the ~0.35us per-grid-step overhead, a
    # multiple of 128 lanes, capped at 32768, and chosen so there are >= 2 grid
    # steps whenever B allows it (so the "parallel" axis shards across both
    # v7x TensorCores instead of leaving one idle).
    if B <= 128:
        tb = B
    else:
        cap = max(128, (min(int(tile_b), 32768) // 128) * 128)
        tb = min(cap, 128 * pl.cdiv(pl.cdiv(B, 2), 128))
    steps = pl.cdiv(B, tb)

    # Weights presented as [out, in] so the kernel computes W @ x^T; the mu and
    # sigma heads are fused into one [2A, H] matrix (single MXU matmul).  These
    # are weight-sized copies (~KB); in a training loop pre-pack them once.
    w1 = params["w1"].T                                               # [H, S]
    b1 = params["b1"].T                                               # [H, 1]
    w2 = params["w2"].T                                               # [H, H]
    b2 = params["b2"].T                                               # [H, 1]
    wh = jnp.concatenate([params["wmu"].T, params["ws"].T], axis=0)   # [2A, H]
    bh = jnp.concatenate([params["bmu"], params["bs"]], axis=1).T     # [2A, 1]

    stream = lambda i: (i, 0)         # per-batch-tile DMA (auto double-buffered)
    resident = lambda i: (0, 0)       # same block every step -> stays in VMEM
    pipe = {} if input_buffers is None else dict(
        pipeline_mode=pl.Buffered(int(input_buffers)))

    kernel = _make_actor_kernel(A, float(action_range), sample)

    n = steps * tb                    # includes the padded tail of the last block
    flops = 2 * n * (S * H + H * H + H * 2 * A + A * A) + 14 * n * A
    transcendentals = 4 * n * A       # tanh, exp, log1p, log per action element
    bytes_accessed = 4 * (B * (S + A + 3 * A)
                          + H * (S + 1) + H * (H + 1) + 2 * A * (H + 1))

    # Scoped-VMEM limit scaled with the tile: double-buffered streamed blocks
    # plus the live [H, tb] f32 intermediates.  Lets 16k-32k tiles compile past
    # v5e's 16 MiB default while staying under v7x's 64 MiB physical VMEM.
    est = 4 * tb * (2 * (S + A + 3 * A) + 12 * H)
    vmem_limit = int(min(100 * 1024 * 1024, max(32 * 1024 * 1024, 2 * est)))

    return pl.pallas_call(
        kernel,
        out_shape=jax.ShapeDtypeStruct((3 * A, B), jnp.float32),
        grid=(steps,),
        in_specs=[
            pl.BlockSpec((tb, S), stream, **pipe),    # state       (streamed)
            pl.BlockSpec((tb, A), stream, **pipe),    # eps/action  (streamed)
            pl.BlockSpec((H, S), resident),           # fc1 W^T     (VMEM-resident)
            pl.BlockSpec((H, 1), resident),           # fc1 b
            pl.BlockSpec((H, H), resident),           # fc2 W^T
            pl.BlockSpec((H, 1), resident),           # fc2 b
            pl.BlockSpec((2 * A, H), resident),       # fused mu|sigma head W^T
            pl.BlockSpec((2 * A, 1), resident),       # fused mu|sigma head b
        ],
        out_specs=pl.BlockSpec((3 * A, tb), lambda i: (0, i)),
        compiler_params=pltpu.CompilerParams(
            dimension_semantics=("parallel",),
            vmem_limit_bytes=vmem_limit),
        cost_estimate=pl.CostEstimate(
            flops=flops, transcendentals=transcendentals,
            bytes_accessed=bytes_accessed),
    )(state, e, w1, b1, w2, b2, wh, bh)


def unpack_actor_outputs(packed, action_dim):
    """Layout plumbing for consumers that insist on the module's [B, A] outputs."""
    A = action_dim
    return packed[:A].T, packed[A:2 * A].T, packed[2 * A:].T


def a2c_actor_cont(state, params, action_range, *, eps=None, action=None, **kw):
    """Module-compatible forward: returns (action, log_prob, entropy), each [B, A]."""
    A = (eps if action is None else action).shape[1]
    packed = a2c_actor_cont_packed(state, params, action_range,
                                   eps=eps, action=action, **kw)
    return unpack_actor_outputs(packed, A)


def init_params(key, state_dim, action_dim):
    ks = jax.random.split(key, 8)

    def lin(kw, kb, fan_in, fan_out):
        bound = 1.0 / math.sqrt(fan_in)
        w = jax.random.uniform(kw, (fan_in, fan_out), jnp.float32, -bound, bound)
        b = jax.random.uniform(kb, (1, fan_out), jnp.float32, -bound, bound)
        return w, b

    w1, b1 = lin(ks[0], ks[1], state_dim, 16)
    w2, b2 = lin(ks[2], ks[3], 16, 16)
    wmu, bmu = lin(ks[4], ks[5], 16, action_dim)
    ws, bs = lin(ks[6], ks[7], 16, action_dim)
    return dict(w1=w1, b1=b1, w2=w2, b2=b2, wmu=wmu, bmu=bmu, ws=ws, bs=bs)


# TODO(synk): dist.sample()'s RNG stays outside the kernel (explicit eps input,
# i.e. a reparameterized draw); an in-kernel pltpu.prng_* draw could fold it in
# if callers do not need JAX-key-reproducible noise.

if __name__ == "__main__":
    state_dim, action_dim, action_range = 8, 4, 1.0
    batch = 300   # -> tb=256, 2 grid steps, partial (44-valid-row) last block

    key = jax.random.PRNGKey(0)
    k_param, k_state, k_eps, k_act = jax.random.split(key, 4)

    params = init_params(k_param, state_dim, action_dim)
    state = jax.random.normal(k_state, (batch, state_dim), jnp.float32)
    eps = jax.random.normal(k_eps, (batch, action_dim), jnp.float32)

    # Fast path: packed [3A, B] slab straight out of the kernel (no wrapper copies).
    packed = a2c_actor_cont_packed(state, params, action_range, eps=eps)
    jax.block_until_ready(packed)
    assert packed.shape == (3 * action_dim, batch)
    action, log_prob, entropy = unpack_actor_outputs(packed, action_dim)

    # Pure-JAX reference (same math as the PyTorch module's sample path).
    h1 = jnp.maximum(state @ params["w1"] + params["b1"], 0.0)
    h2 = jnp.maximum(h1 @ params["w2"] + params["b2"], 0.0)
    mu = 2.0 * jnp.tanh(h2 @ params["wmu"] + params["bmu"])
    sigma = jax.nn.softplus(h2 @ params["ws"] + params["bs"])
    act_ref = jnp.clip(mu + sigma * eps, -action_range, action_range)
    ent_ref = 0.5 + _LOG_SQRT_2PI + jnp.log(sigma)
    lp_ref = (-0.5 * ((act_ref - mu) / sigma) ** 2
              - jnp.log(sigma) - _LOG_SQRT_2PI)

    assert action.shape == (batch, action_dim)
    assert jnp.allclose(action, act_ref, atol=1e-4, rtol=1e-4)
    assert jnp.allclose(entropy, ent_ref, atol=1e-4, rtol=1e-4)
    # Exact in-kernel divide now (was 2e-2 tolerance with the approx reciprocal).
    assert jnp.allclose(log_prob, lp_ref, atol=1e-3, rtol=1e-3)

    # Evaluation path: log_prob/entropy of a caller-supplied action.
    given = 1.5 * jnp.tanh(jax.random.normal(k_act, (batch, action_dim), jnp.float32))
    a2, lp2, en2 = a2c_actor_cont(state, params, action_range, action=given)
    jax.block_until_ready((a2, lp2, en2))
    a2_ref = jnp.clip(given, -action_range, action_range)
    lp2_ref = (-0.5 * ((a2_ref - mu) / sigma) ** 2
               - jnp.log(sigma) - _LOG_SQRT_2PI)
    assert jnp.allclose(a2, a2_ref, atol=1e-4, rtol=1e-4)
    assert jnp.allclose(lp2, lp2_ref, atol=1e-3, rtol=1e-3)
    assert jnp.allclose(en2, ent_ref, atol=1e-4, rtol=1e-4)

    print("KERNEL_OK")
</pallas_src>

<mosaic_0001>
module attributes {stable_mosaic.version = 11 : i64} {
  func.func @actor_kernel(%arg0: i32, %arg1: memref<256x8xf32, #tpu.memory_space<vmem>>, %arg2: memref<256x4xf32, #tpu.memory_space<vmem>>, %arg3: memref<16x8xf32, #tpu.memory_space<vmem>>, %arg4: memref<16x1xf32, #tpu.memory_space<vmem>>, %arg5: memref<16x16xf32, #tpu.memory_space<vmem>>, %arg6: memref<16x1xf32, #tpu.memory_space<vmem>>, %arg7: memref<8x16xf32, #tpu.memory_space<vmem>>, %arg8: memref<8x1xf32, #tpu.memory_space<vmem>>, %arg9: memref<12x256xf32, #tpu.memory_space<vmem>>) attributes {dimension_semantics = [#tpu.dimension_semantics<parallel>], iteration_bounds = array<i64: 2>, scalar_prefetch = 0 : i64, scratch_operands = 0 : i64, tpu.core_type = #tpu.core_type<tc>, window_params = [{transform_indices = @transform_0, window_bounds = array<i64: 256, 8>}, {transform_indices = @transform_1, window_bounds = array<i64: 256, 4>}, {pipeline_mode = #tpu.pipeline_mode<synchronous>, transform_indices = @transform_2, window_bounds = array<i64: 16, 8>}, {pipeline_mode = #tpu.pipeline_mode<synchronous>, transform_indices = @transform_3, window_bounds = array<i64: 16, 1>}, {pipeline_mode = #tpu.pipeline_mode<synchronous>, transform_indices = @transform_4, window_bounds = array<i64: 16, 16>}, {pipeline_mode = #tpu.pipeline_mode<synchronous>, transform_indices = @transform_5, window_bounds = array<i64: 16, 1>}, {pipeline_mode = #tpu.pipeline_mode<synchronous>, transform_indices = @transform_6, window_bounds = array<i64: 8, 16>}, {pipeline_mode = #tpu.pipeline_mode<synchronous>, transform_indices = @transform_7, window_bounds = array<i64: 8, 1>}, {transform_indices = @transform_8, window_bounds = array<i64: 12, 256>}]} {
    %c0 = arith.constant 0 : index
    %c0_0 = arith.constant 0 : index
    %0 = vector.load %arg3[%c0, %c0_0] : memref<16x8xf32, #tpu.memory_space<vmem>>, vector<16x8xf32>
    %c0_1 = arith.constant 0 : index
    %c0_2 = arith.constant 0 : index
    %1 = vector.load %arg1[%c0_1, %c0_2] : memref<256x8xf32, #tpu.memory_space<vmem>>, vector<256x8xf32>
    %cst = arith.constant dense<0.000000e+00> : vector<16x256xf32>
    %2 = tpu.matmul %0, %1, %cst {dimension_numbers = #tpu.dot_dimension_numbers<[1], [1], [0], [0], [0, 0, 1, 0], [], []>} : vector<16x8xf32>, vector<256x8xf32>, vector<16x256xf32> -> vector<16x256xf32>
    %c0_3 = arith.constant 0 : index
    %c0_4 = arith.constant 0 : index
    %3 = vector.load %arg4[%c0_3, %c0_4] : memref<16x1xf32, #tpu.memory_space<vmem>>, vector<16x1xf32>
    %4 = vector.broadcast %3 : vector<16x1xf32> to vector<16x256xf32>
    %5 = arith.addf %2, %4 : vector<16x256xf32>
    %cst_5 = arith.constant 0.000000e+00 : f32
    %6 = vector.broadcast %cst_5 : f32 to vector<16x256xf32>
    %7 = arith.maximumf %5, %6 : vector<16x256xf32>
    %c0_6 = arith.constant 0 : index
    %c0_7 = arith.constant 0 : index
    %8 = vector.load %arg5[%c0_6, %c0_7] : memref<16x16xf32, #tpu.memory_space<vmem>>, vector<16x16xf32>
    %cst_8 = arith.constant dense<0.000000e+00> : vector<16x256xf32>
    %9 = tpu.matmul %8, %7, %cst_8 {dimension_numbers = #tpu.dot_dimension_numbers<[1], [0], [0], [1], [0, 0, 1, 1], [], []>} : vector<16x16xf32>, vector<16x256xf32>, vector<16x256xf32> -> vector<16x256xf32>
    %c0_9 = arith.constant 0 : index
    %c0_10 = arith.constant 0 : index
    %10 = vector.load %arg6[%c0_9, %c0_10] : memref<16x1xf32, #tpu.memory_space<vmem>>, vector<16x1xf32>
    %11 = vector.broadcast %10 : vector<16x1xf32> to vector<16x256xf32>
    %12 = arith.addf %9, %11 : vector<16x256xf32>
    %cst_11 = arith.constant 0.000000e+00 : f32
    %13 = vector.broadcast %cst_11 : f32 to vector<16x256xf32>
    %14 = arith.maximumf %12, %13 : vector<16x256xf32>
    %c0_12 = arith.constant 0 : index
    %c0_13 = arith.constant 0 : index
    %15 = vector.load %arg7[%c0_12, %c0_13] : memref<8x16xf32, #tpu.memory_space<vmem>>, vector<8x16xf32>
    %cst_14 = arith.constant dense<0.000000e+00> : vector<8x256xf32>
    %16 = tpu.matmul %15, %14, %cst_14 {dimension_numbers = #tpu.dot_dimension_numbers<[1], [0], [0], [1], [0, 0, 1, 1], [], []>} : vector<8x16xf32>, vector<16x256xf32>, vector<8x256xf32> -> vector<8x256xf32>
    %c0_15 = arith.constant 0 : index
    %c0_16 = arith.constant 0 : index
    %17 = vector.load %arg8[%c0_15, %c0_16] : memref<8x1xf32, #tpu.memory_space<vmem>>, vector<8x1xf32>
    %18 = vector.broadcast %17 : vector<8x1xf32> to vector<8x256xf32>
    %19 = arith.addf %16, %18 : vector<8x256xf32>
    %20 = vector.extract_strided_slice %19 {offsets = [0, 0], sizes = [4, 256], strides = [1, 1]} : vector<8x256xf32> to vector<4x256xf32>
    %21 = math.tanh %20 : vector<4x256xf32>
    %cst_17 = arith.constant 2.000000e+00 : f32
    %22 = vector.broadcast %cst_17 : f32 to vector<4x256xf32>
    %23 = arith.mulf %22, %21 : vector<4x256xf32>
    %24 = vector.extract_strided_slice %19 {offsets = [4, 0], sizes = [4, 256], strides = [1, 1]} : vector<8x256xf32> to vector<4x256xf32>
    %cst_18 = arith.constant 2.000000e+01 : f32
    %25 = vector.broadcast %cst_18 : f32 to vector<4x256xf32>
    %26 = arith.cmpf ogt, %24, %25 : vector<4x256xf32>
    %cst_19 = arith.constant 2.000000e+01 : f32
    %27 = vector.broadcast %cst_19 : f32 to vector<4x256xf32>
    %28 = arith.minimumf %24, %27 : vector<4x256xf32>
    %29 = math.exp %28 : vector<4x256xf32>
    %30 = math.log1p %29 : vector<4x256xf32>
    %31 = arith.select %26, %24, %30 : vector<4x256xi1>, vector<4x256xf32>
    %32 = tpu.iota {dimensions = array<i32: 0>} : vector<4x4xi32>
    %33 = tpu.iota {dimensions = array<i32: 1>} : vector<4x4xi32>
    %34 = arith.cmpi eq, %32, %33 : vector<4x4xi32>
    %35 = arith.extui %34 : vector<4x4xi1> to vector<4x4xi32>
    %36 = arith.sitofp %35 : vector<4x4xi32> to vector<4x4xf32>
    %c0_20 = arith.constant 0 : index
    %c0_21 = arith.constant 0 : index
    %37 = vector.load %arg2[%c0_20, %c0_21] : memref<256x4xf32, #tpu.memory_space<vmem>>, vector<256x4xf32>
    %cst_22 = arith.constant dense<0.000000e+00> : vector<4x256xf32>
    %38 = tpu.matmul %36, %37, %cst_22 {dimension_numbers = #tpu.dot_dimension_numbers<[1], [1], [0], [0], [0, 0, 1, 0], [], []>} : vector<4x4xf32>, vector<256x4xf32>, vector<4x256xf32> -> vector<4x256xf32>
    %39 = arith.mulf %31, %38 : vector<4x256xf32>
    %40 = arith.addf %23, %39 : vector<4x256xf32>
    %cst_23 = arith.constant -1.000000e+00 : f32
    %cst_24 = arith.constant 1.000000e+00 : f32
    %41 = vector.broadcast %cst_23 : f32 to vector<4x256xf32>
    %42 = arith.maximumf %41, %40 : vector<4x256xf32>
    %43 = vector.broadcast %cst_24 : f32 to vector<4x256xf32>
    %44 = arith.minimumf %43, %42 : vector<4x256xf32>
    %45 = math.log %31 : vector<4x256xf32>
    %46 = arith.subf %44, %23 : vector<4x256xf32>
    %47 = arith.divf %46, %31 : vector<4x256xf32>
    %cst_25 = arith.constant -5.000000e-01 : f32
    %48 = vector.broadcast %cst_25 : f32 to vector<4x256xf32>
    %49 = arith.mulf %48, %47 : vector<4x256xf32>
    %50 = arith.mulf %49, %47 : vector<4x256xf32>
    %51 = arith.subf %50, %45 : vector<4x256xf32>
    %cst_26 = arith.constant 0.918938517 : f32
    %52 = vector.broadcast %cst_26 : f32 to vector<4x256xf32>
    %53 = arith.subf %51, %52 : vector<4x256xf32>
    %cst_27 = arith.constant 1.41893852 : f32
    %54 = vector.broadcast %cst_27 : f32 to vector<4x256xf32>
    %55 = arith.addf %54, %45 : vector<4x256xf32>
    %56 = tpu.concatenate %44, %53, %55 in 0 : vector<4x256xf32>, vector<4x256xf32>, vector<4x256xf32> -> vector<12x256xf32>
    %c0_28 = arith.constant 0 : index
    %c0_29 = arith.constant 0 : index
    %57 = vector.load %arg9[%c0_28, %c0_29] : memref<12x256xf32, #tpu.memory_space<vmem>>, vector<12x256xf32>
    tpu.vector_store %arg9[%c0_28, %c0_29], %56 {strides = array<i32>} : memref<12x256xf32, #tpu.memory_space<vmem>>, vector<12x256xf32>,
    return
  }
  func.func @transform_0(%arg0: i32) -> (i32, i32) {
    %c0_i32 = arith.constant 0 : i32
    %c0_i32_0 = arith.constant 0 : i32
    return %arg0, %c0_i32 : i32, i32
  }
  func.func @transform_1(%arg0: i32) -> (i32, i32) {
    %c0_i32 = arith.constant 0 : i32
    %c0_i32_0 = arith.constant 0 : i32
    return %arg0, %c0_i32 : i32, i32
  }
  func.func @transform_2(%arg0: i32) -> (i32, i32) {
    %c0_i32 = arith.constant 0 : i32
    %c0_i32_0 = arith.constant 0 : i32
    %c0_i32_1 = arith.constant 0 : i32
    return %c0_i32, %c0_i32_0 : i32, i32
  }
  func.func @transform_3(%arg0: i32) -> (i32, i32) {
    %c0_i32 = arith.constant 0 : i32
    %c0_i32_0 = arith.constant 0 : i32
    %c0_i32_1 = arith.constant 0 : i32
    return %c0_i32, %c0_i32_0 : i32, i32
  }
  func.func @transform_4(%arg0: i32) -> (i32, i32) {
    %c0_i32 = arith.constant 0 : i32
    %c0_i32_0 = arith.constant 0 : i32
    %c0_i32_1 = arith.constant 0 : i32
    return %c0_i32, %c0_i32_0 : i32, i32
  }
  func.func @transform_5(%arg0: i32) -> (i32, i32) {
    %c0_i32 = arith.constant 0 : i32
    %c0_i32_0 = arith.constant 0 : i32
    %c0_i32_1 = arith.constant 0 : i32
    return %c0_i32, %c0_i32_0 : i32, i32
  }
  func.func @transform_6(%arg0: i32) -> (i32, i32) {
    %c0_i32 = arith.constant 0 : i32
    %c0_i32_0 = arith.constant 0 : i32
    %c0_i32_1 = arith.constant 0 : i32
    return %c0_i32, %c0_i32_0 : i32, i32
  }
  func.func @transform_7(%arg0: i32) -> (i32, i32) {
    %c0_i32 = arith.constant 0 : i32
    %c0_i32_0 = arith.constant 0 : i32
    %c0_i32_1 = arith.constant 0 : i32
    return %c0_i32, %c0_i32_0 : i32, i32
  }
  func.func @transform_8(%arg0: i32) -> (i32, i32) {
    %c0_i32 = arith.constant 0 : i32
    %c0_i32_0 = arith.constant 0 : i32
    return %c0_i32, %arg0 : i32, i32
  }
}

</mosaic_0001>

<llo_original>
// kernel: tpu_custom_call.1
$region0: #{tpu_custom_call.1}
  #allocation0 [shape = 'u32[]', space=smem, size = 0x4, offset = 0x4, fixed_abs, tag = 'smem constant byte address 0x4 - core index']
  #allocation1 [shape = 'u32[144,128]{1,0:T(1,128)}', space=vmem, size = 0x12000, scoped, tag = 'internal scratch']
  %s0 = inlined_call_operand.vmem [shape: f32[300,8], index: 0, kind: input, shape index: {}]
  %s1 = inlined_call_operand.vmem [shape: f32[300,4], index: 1, kind: input, shape index: {}]
  %s2 = inlined_call_operand.vmem [shape: f32[16,8], index: 2, kind: input, shape index: {}]
  %s3 = inlined_call_operand.vmem [shape: f32[16,1], index: 3, kind: input, shape index: {}]
  %s4 = inlined_call_operand.vmem [shape: f32[16,16], index: 4, kind: input, shape index: {}]
  %s5 = inlined_call_operand.vmem [shape: f32[16,1], index: 5, kind: input, shape index: {}]
  %s6 = inlined_call_operand.vmem [shape: f32[8,16], index: 6, kind: input, shape index: {}]
  %s7 = inlined_call_operand.vmem [shape: f32[8,1], index: 7, kind: input, shape index: {}]
  %s8 = inlined_call_operand.hbm [shape: f32[12,300], index: 8, kind: output, shape index: {}]
  %s9 = sld [smem:[#allocation0]]
  $region65: #{tpu_custom_call.1} parent=0
    _
  %s11 = ssub.s32 1, %s9
  %s12 = scalar_select 0, %s11, %s9
  $region1: #{tpu_custom_call.1} parent=0
    #allocation2 [shape = 'u8[32768]{0}', space=vmem, size = 0x8000, scoped, tag = 'output window, operand 0']
    #allocation3 [shape = 's32[2]{0}', space=sflag, size = 0x8, scoped, tag = 'scoped memory for tpu_custom_call.1']
    %13 = vsyncpa [#allocation3], 0
    %s14 = scalar_lea.sflag [#allocation3], 1
    %15 = vsyncpa %s14, 0
    loop: start=0, step=1, limit=4
    $region2: #{tpu_custom_call.1} parent=1 // loop_pre_header
      _
    $region3: #{tpu_custom_call.1} parent=1 // loop_header
      %s17 = sphi 0, %s21
      %p18 = scmp.ge.s32.totalorder %s17, 4
      %s27 = sphi 0, %s29
      %s30 = sphi 0, %s27
      %s31 = sphi 0, %s30
      %s47 = sphi 0, %s31
      %s53 = sphi 0, %s55
      %s56 = sphi 0, %s53
      %s57 = sphi 0, %s56
      %s73 = sphi 0, %s57
      %s77 = sphi 0, %s77
      %s79 = sphi 0, %s77
      %s80 = sphi 0, %s79
      %s94 = sphi 0, %s80
      %s98 = sphi 0, %s98
      %s100 = sphi 0, %s98
      %s101 = sphi 0, %s100
      %s115 = sphi 0, %s101
      %s119 = sphi 0, %s119
      %s121 = sphi 0, %s119
      %s122 = sphi 0, %s121
      %s136 = sphi 0, %s122
      %s140 = sphi 0, %s140
      %s142 = sphi 0, %s140
      %s143 = sphi 0, %s142
      %s157 = sphi 0, %s143
      %s161 = sphi 0, %s161
      %s163 = sphi 0, %s161
      %s164 = sphi 0, %s163
      %s178 = sphi 0, %s164
      %s182 = sphi 0, %s182
      %s184 = sphi 0, %s182
      %s185 = sphi 0, %s184
      %s199 = sphi 0, %s185
      %s205 = sphi 0, %s207
      %s208 = sphi 0, %s205
      %s209 = sphi 0, %s208
      %s225 = sphi 0, %s209
    $region4: #{tpu_custom_call.1} parent=1 // loop_header_branch
      %20 = sbr.rel (%p18) target = $region8
    $region5: #{tpu_custom_call.1} parent=1 // loop_body
      %s22 = ssub.s32 %s17, 1
      %s23 = ssub.s32 %s17, 2
      %s24 = sadd.s32 %s17, 1
      %s25 = ssub.s32 %s17, %s24
      %p26 = scmp.eq.s32.totalorder %s25, 0
      %s28 = sadd.s32 %s27, 1
      %s29 = scalar_select %p26, %s27, %s28
      %p32 = pneg %p26
      %p33 = scmp.eq.s32.totalorder %s17, 1
      %p34 = por %p32, %p33
      %p35 = scmp.ne.s32.totalorder %s27, %s30
      %p36 = scmp.eq.s32.totalorder %s17, 0
      %p37 = por %p35, %p36
      %p38 = scmp.ne.s32.totalorder %s27, %s30
      %p39 = scmp.eq.s32.totalorder %s22, 1
      %p40 = por %p38, %p39
      %p41 = scmp.ne.s32.totalorder %s30, %s31
      %p42 = scmp.eq.s32.totalorder %s22, 0
      %p43 = por %p41, %p42
      %p44 = scmp.ne.s32.totalorder %s30, %s31
      %p45 = scmp.eq.s32.totalorder %s23, 1
      %p46 = por %p44, %p45
      %p48 = scmp.ne.s32.totalorder %s31, %s47
      %p49 = scmp.eq.s32.totalorder %s23, 0
      %p50 = por %p48, %p49
      %s51 = ssub.s32 %s17, %s24
      %p52 = scmp.eq.s32.totalorder %s51, 0
      %s54 = sadd.s32 %s53, 1
      %s55 = scalar_select %p52, %s53, %s54
      %p58 = pneg %p52
      %p59 = scmp.eq.s32.totalorder %s17, 1
      %p60 = por %p58, %p59
      %p61 = scmp.ne.s32.totalorder %s53, %s56
      %p62 = scmp.eq.s32.totalorder %s17, 0
      %p63 = por %p61, %p62
      %p64 = scmp.ne.s32.totalorder %s53, %s56
      %p65 = scmp.eq.s32.totalorder %s22, 1
      %p66 = por %p64, %p65
      %p67 = scmp.ne.s32.totalorder %s56, %s57
      %p68 = scmp.eq.s32.totalorder %s22, 0
      %p69 = por %p67, %p68
      %p70 = scmp.ne.s32.totalorder %s56, %s57
      %p71 = scmp.eq.s32.totalorder %s23, 1
      %p72 = por %p70, %p71
      %p74 = scmp.ne.s32.totalorder %s57, %s73
      %p75 = scmp.eq.s32.totalorder %s23, 0
      %p76 = por %p74, %p75
      %s78 = sadd.s32 %s77, 1
      %p81 = scmp.eq.s32.totalorder %s17, 1
      %p82 = scmp.ne.s32.totalorder %s77, %s79
      %p83 = scmp.eq.s32.totalorder %s17, 0
      %p84 = por %p82, %p83
      %p85 = scmp.ne.s32.totalorder %s77, %s79
      %p86 = scmp.eq.s32.totalorder %s22, 1
      %p87 = por %p85, %p86
      %p88 = scmp.ne.s32.totalorder %s79, %s80
      %p89 = scmp.eq.s32.totalorder %s22, 0
      %p90 = por %p88, %p89
      %p91 = scmp.ne.s32.totalorder %s79, %s80
      %p92 = scmp.eq.s32.totalorder %s23, 1
      %p93 = por %p91, %p92
      %p95 = scmp.ne.s32.totalorder %s80, %s94
      %p96 = scmp.eq.s32.totalorder %s23, 0
      %p97 = por %p95, %p96
      %s99 = sadd.s32 %s98, 1
      %p102 = scmp.eq.s32.totalorder %s17, 1
      %p103 = scmp.ne.s32.totalorder %s98, %s100
      %p104 = scmp.eq.s32.totalorder %s17, 0
      %p105 = por %p103, %p104
      %p106 = scmp.ne.s32.totalorder %s98, %s100
      %p107 = scmp.eq.s32.totalorder %s22, 1
      %p108 = por %p106, %p107
      %p109 = scmp.ne.s32.totalorder %s100, %s101
      %p110 = scmp.eq.s32.totalorder %s22, 0
      %p111 = por %p109, %p110
      %p112 = scmp.ne.s32.totalorder %s100, %s101
      %p113 = scmp.eq.s32.totalorder %s23, 1
      %p114 = por %p112, %p113
      %p116 = scmp.ne.s32.totalorder %s101, %s115
      %p117 = scmp.eq.s32.totalorder %s23, 0
      %p118 = por %p116, %p117
      %s120 = sadd.s32 %s119, 1
      %p123 = scmp.eq.s32.totalorder %s17, 1
      %p124 = scmp.ne.s32.totalorder %s119, %s121
      %p125 = scmp.eq.s32.totalorder %s17, 0
      %p126 = por %p124, %p125
      %p127 = scmp.ne.s32.totalorder %s119, %s121
      %p128 = scmp.eq.s32.totalorder %s22, 1
      %p129 = por %p127, %p128
      %p130 = scmp.ne.s32.totalorder %s121, %s122
      %p131 = scmp.eq.s32.totalorder %s22, 0
      %p132 = por %p130, %p131
      %p133 = scmp.ne.s32.totalorder %s121, %s122
      %p134 = scmp.eq.s32.totalorder %s23, 1
      %p135 = por %p133, %p134
      %p137 = scmp.ne.s32.totalorder %s122, %s136
      %p138 = scmp.eq.s32.totalorder %s23, 0
      %p139 = por %p137, %p138
      %s141 = sadd.s32 %s140, 1
      %p144 = scmp.eq.s32.totalorder %s17, 1
      %p145 = scmp.ne.s32.totalorder %s140, %s142
      %p146 = scmp.eq.s32.totalorder %s17, 0
      %p147 = por %p145, %p146
      %p148 = scmp.ne.s32.totalorder %s140, %s142
      %p149 = scmp.eq.s32.totalorder %s22, 1
      %p150 = por %p148, %p149
      %p151 = scmp.ne.s32.totalorder %s142, %s143
      %p152 = scmp.eq.s32.totalorder %s22, 0
      %p153 = por %p151, %p152
      %p154 = scmp.ne.s32.totalorder %s142, %s143
      %p155 = scmp.eq.s32.totalorder %s23, 1
      %p156 = por %p154, %p155
      %p158 = scmp.ne.s32.totalorder %s143, %s157
      %p159 = scmp.eq.s32.totalorder %s23, 0
      %p160 = por %p158, %p159
      %s162 = sadd.s32 %s161, 1
      %p165 = scmp.eq.s32.totalorder %s17, 1
      %p166 = scmp.ne.s32.totalorder %s161, %s163
      %p167 = scmp.eq.s32.totalorder %s17, 0
      %p168 = por %p166, %p167
      %p169 = scmp.ne.s32.totalorder %s161, %s163
      %p170 = scmp.eq.s32.totalorder %s22, 1
      %p171 = por %p169, %p170
      %p172 = scmp.ne.s32.totalorder %s163, %s164
      %p173 = scmp.eq.s32.totalorder %s22, 0
      %p174 = por %p172, %p173
      %p175 = scmp.ne.s32.totalorder %s163, %s164
      %p176 = scmp.eq.s32.totalorder %s23, 1
      %p177 = por %p175, %p176
      %p179 = scmp.ne.s32.totalorder %s164, %s178
      %p180 = scmp.eq.s32.totalorder %s23, 0
      %p181 = por %p179, %p180
      %s183 = sadd.s32 %s182, 1
      %p186 = scmp.eq.s32.totalorder %s17, 1
      %p187 = scmp.ne.s32.totalorder %s182, %s184
      %p188 = scmp.eq.s32.totalorder %s17, 0
      %p189 = por %p187, %p188
      %p190 = scmp.ne.s32.totalorder %s182, %s184
      %p191 = scmp.eq.s32.totalorder %s22, 1
      %p192 = por %p190, %p191
      %p193 = scmp.ne.s32.totalorder %s184, %s185
      %p194 = scmp.eq.s32.totalorder %s22, 0
      %p195 = por %p193, %p194
      %p196 = scmp.ne.s32.totalorder %s184, %s185
      %p197 = scmp.eq.s32.totalorder %s23, 1
      %p198 = por %p196, %p197
      %p200 = scmp.ne.s32.totalorder %s185, %s199
      %p201 = scmp.eq.s32.totalorder %s23, 0
      %p202 = por %p200, %p201
      %s203 = ssub.s32 %s17, %s24
      %p204 = scmp.eq.s32.totalorder %s203, 0
      %s206 = sadd.s32 %s205, 1
      %s207 = scalar_select %p204, %s205, %s206
      %p210 = pneg %p204
      %p211 = scmp.eq.s32.totalorder %s17, 1
      %p212 = por %p210, %p211
      %p213 = scmp.ne.s32.totalorder %s205, %s208
      %p214 = scmp.eq.s32.totalorder %s17, 0
      %p215 = por %p213, %p214
      %p216 = scmp.ne.s32.totalorder %s205, %s208
      %p217 = scmp.eq.s32.totalorder %s22, 1
      %p218 = por %p216, %p217
      %p219 = scmp.ne.s32.totalorder %s208, %s209
      %p220 = scmp.eq.s32.totalorder %s22, 0
      %p221 = por %p219, %p220
      %p222 = scmp.ne.s32.totalorder %s208, %s209
      %p223 = scmp.eq.s32.totalorder %s23, 1
      %p224 = por %p222, %p223
      %p226 = scmp.ne.s32.totalorder %s209, %s225
      %p227 = scmp.eq.s32.totalorder %s23, 0
      %p228 = por %p226, %p227
      %p229 = scmp.le.s32.totalorder 1, %s17
      %p230 = scmp.lt.s32.totalorder %s17, 3
      %p231 = pnand %p229, %p230
      %p232 = pneg %p231
      // Predicated region
      $region9: #{tpu_custom_call.1} parent=5 // pred_check
        _
      $region10: #{tpu_custom_call.1} parent=5 // pred_check_branch
        %234 = sbr.rel (%p231) target = $region12
      $region11: #{tpu_custom_call.1} parent=5 // pred_region
        %s235 = ssub.s32 %s17, 1
        // Predicated region
        $region13: #{tpu_custom_call.1} parent=11 // pred_check
          %p236 = pneg %p90
        $region14: #{tpu_custom_call.1} parent=11 // pred_check_branch
          %238 = sbr.rel (%p236) target = $region16
        $region15: #{tpu_custom_call.1} parent=11 // pred_region
          _
        $region16: #{tpu_custom_call.1} parent=11 // pred_fallthru
          _
        // Predicated region
        $region17: #{tpu_custom_call.1} parent=11 // pred_check
          %p239 = pneg %p111
        $region18: #{tpu_custom_call.1} parent=11 // pred_check_branch
          %241 = sbr.rel (%p239) target = $region20
        $region19: #{tpu_custom_call.1} parent=11 // pred_region
          _
        $region20: #{tpu_custom_call.1} parent=11 // pred_fallthru
          _
        // Predicated region
        $region21: #{tpu_custom_call.1} parent=11 // pred_check
          %p242 = pneg %p132
        $region22: #{tpu_custom_call.1} parent=11 // pred_check_branch
          %244 = sbr.rel (%p242) target = $region24
        $region23: #{tpu_custom_call.1} parent=11 // pred_region
          _
        $region24: #{tpu_custom_call.1} parent=11 // pred_fallthru
          _
        // Predicated region
        $region25: #{tpu_custom_call.1} parent=11 // pred_check
          %p245 = pneg %p153
        $region26: #{tpu_custom_call.1} parent=11 // pred_check_branch
          %247 = sbr.rel (%p245) target = $region28
        $region27: #{tpu_custom_call.1} parent=11 // pred_region
          _
        $region28: #{tpu_custom_call.1} parent=11 // pred_fallthru
          _
        // Predicated region
        $region29: #{tpu_custom_call.1} parent=11 // pred_check
          %p248 = pneg %p174
        $region30: #{tpu_custom_call.1} parent=11 // pred_check_branch
          %250 = sbr.rel (%p248) target = $region32
        $region31: #{tpu_custom_call.1} parent=11 // pred_region
          _
        $region32: #{tpu_custom_call.1} parent=11 // pred_fallthru
          _
        // Predicated region
        $region33: #{tpu_custom_call.1} parent=11 // pred_check
          %p251 = pneg %p195
        $region34: #{tpu_custom_call.1} parent=11 // pred_check_branch
          %253 = sbr.rel (%p251) target = $region36
        $region35: #{tpu_custom_call.1} parent=11 // pred_region
          _
        $region36: #{tpu_custom_call.1} parent=11 // pred_fallthru
          _
      $region12: #{tpu_custom_call.1} parent=5 // pred_fallthru
        _
      %p254 = scmp.lt.s32.totalorder %s17, 2
      // Predicated region
      $region37: #{tpu_custom_call.1} parent=5 // pred_check
        %p255 = pneg %p254
      $region38: #{tpu_custom_call.1} parent=5 // pred_check_branch
        %257 = sbr.rel (%p255) target = $region40
      $region39: #{tpu_custom_call.1} parent=5 // pred_region
        // Predicated region
        $region41: #{tpu_custom_call.1} parent=39 // pred_check
          %p258 = pneg %p37
        $region42: #{tpu_custom_call.1} parent=39 // pred_check_branch
          %260 = sbr.rel (%p258) target = $region44
        $region43: #{tpu_custom_call.1} parent=39 // pred_region
          %s261 = smul.u32 32, %s17
          %s262 = ssub.s32 38, %s261
          %p263 = scmp.lt.s32.totalorder %s262, 32
          %s264 = scalar_select %p263, %s262, 32
          %s265 = smul.u32 128, %s264
          %p266 = scmp.lt.s32.totalorder %s261, 37
          %s267 = scalar_select %p266, %s261, 37
          %s268 = smul.addr %s267, 8
          %s269 = scalar_lea.vmem %s0, %s268
          %s270 = smul.u32 32, %s17
          %s271 = ssub.s32 38, %s270
          %p272 = scmp.lt.s32.totalorder %s271, 32
          %s273 = scalar_select %p272, %s271, 32
          %s274 = smul.u32 128, %s273
        $region44: #{tpu_custom_call.1} parent=39 // pred_fallthru
          _
        // Predicated region
        $region45: #{tpu_custom_call.1} parent=39 // pred_check
          %p275 = pneg %p63
        $region46: #{tpu_custom_call.1} parent=39 // pred_check_branch
          %277 = sbr.rel (%p275) target = $region48
        $region47: #{tpu_custom_call.1} parent=39 // pred_region
          %s278 = smul.u32 32, %s17
          %s279 = ssub.s32 38, %s278
          %p280 = scmp.lt.s32.totalorder %s279, 32
          %s281 = scalar_select %p280, %s279, 32
          %s282 = smul.u32 128, %s281
          %p283 = scmp.lt.s32.totalorder %s278, 37
          %s284 = scalar_select %p283, %s278, 37
          %s285 = smul.addr %s284, 8
          %s286 = scalar_lea.vmem %s1, %s285
          %s287 = smul.u32 32, %s17
          %s288 = ssub.s32 38, %s287
          %p289 = scmp.lt.s32.totalorder %s288, 32
          %s290 = scalar_select %p289, %s288, 32
          %s291 = smul.u32 128, %s290
        $region48: #{tpu_custom_call.1} parent=39 // pred_fallthru
          _
      $region40: #{tpu_custom_call.1} parent=5 // pred_fallthru
        _
      %p292 = scmp.le.s32.totalorder 1, %s17
      %p293 = scmp.lt.s32.totalorder %s17, 3
      %p294 = pnand %p292, %p293
      %p295 = pneg %p294
      // Predicated region
      $region49: #{tpu_custom_call.1} parent=5 // pred_check
        _
      $region50: #{tpu_custom_call.1} parent=5 // pred_check_branch
        %297 = sbr.rel (%p294) target = $region52
      $region51: #{tpu_custom_call.1} parent=5 // pred_region
        %s298 = ssub.s32 %s17, 1
        %s299 = smul.u32 32, %s22
        %s300 = ssub.s32 38, %s299
        %p301 = scmp.lt.s32.totalorder %s300, 32
        %s302 = scalar_select %p301, %s300, 32
        %s303 = smul.u32 128, %s302
        %p304 = scmp.lt.s32.totalorder %s299, 37
        %s305 = scalar_select %p304, %s299, 37
        %s306 = smul.addr %s305, 8
        %s307 = scalar_lea.vmem %s0, %s306
        %p308 = pneg %p43
        %p309 = pneg %p40
        %s310 = smul.u32 32, %s22
        %s311 = ssub.s32 38, %s310
        %p312 = scmp.lt.s32.totalorder %s311, 32
        %s313 = scalar_select %p312, %s311, 32
        %s314 = smul.u32 128, %s313
        %p315 = scmp.lt.s32.totalorder %s310, 37
        %s316 = scalar_select %p315, %s310, 37
        %s317 = smul.addr %s316, 8
        %s318 = scalar_lea.vmem %s1, %s317
        %p319 = pneg %p69
        %p320 = pneg %p66
        %p321 = pneg %p90
        %p322 = pneg %p87
        %p323 = pneg %p111
        %p324 = pneg %p108
        %p325 = pneg %p132
        %p326 = pneg %p129
        %p327 = pneg %p153
        %p328 = pneg %p150
        %p329 = pneg %p174
        %p330 = pneg %p171
        %p331 = pneg %p195
        %p332 = pneg %p192
        %p333 = pneg %p221
        %p334 = pneg %p218
        %s335 = sand.u32 %s208, 1
        %s336 = scalar_lea.sflag [#allocation3], %s335
        %s337 = sand.u32 %s208, 1
        %s338 = smul.addr %s337, 32
        %s339 = scalar_lea.vmem [#allocation2], %s338
        %s340 = smul.u32 32, %s22
        %s341 = ssub.s32 38, %s340
        %p342 = scmp.lt.s32.totalorder %s341, 32
        %s343 = scalar_select %p342, %s341, 32
        %s344 = smul.u32 128, %s343
        %p345 = scmp.lt.s32.totalorder %s340, 37
        %s346 = scalar_select %p345, %s340, 37
        %s347 = smul.addr %s346, 8
        %s348 = scalar_lea.vmem %s0, %s347
        %s349 = smul.u32 32, %s22
        %s350 = ssub.s32 38, %s349
        %p351 = scmp.lt.s32.totalorder %s350, 32
        %s352 = scalar_select %p351, %s350, 32
        %s353 = smul.u32 128, %s352
        %s354 = smul.u32 32, %s22
        %s355 = ssub.s32 38, %s354
        %p356 = scmp.lt.s32.totalorder %s355, 32
        %s357 = scalar_select %p356, %s355, 32
        %s358 = smul.u32 128, %s357
        %p359 = scmp.lt.s32.totalorder %s354, 37
        %s360 = scalar_select %p359, %s354, 37
        %s361 = smul.addr %s360, 8
        %s362 = scalar_lea.vmem %s1, %s361
        %s363 = smul.u32 32, %s22
        %s364 = ssub.s32 38, %s363
        %p365 = scmp.lt.s32.totalorder %s364, 32
        %s366 = scalar_select %p365, %s364, 32
        %s367 = smul.u32 128, %s366
        %s368 = smul.u32 2, %s22
        %s369 = ssub.s32 3, %s368
        %p370 = scmp.lt.s32.totalorder %s369, 2
        %s371 = scalar_select %p370, %s369, 2
        %s372 = smul.u32 256, %s371
        %v373 = vld [vmem:[%s2] sm:$0xff]
        %v374 = vld [vmem:[%s2 + $0x8] sm:$0xff]
        %v375 = vld [vmem:[%s348] sm:$0xff]
        %v376 = vld [vmem:[%s348 + $0x8] sm:$0xff]
        %v377 = vld [vmem:[%s348 + $0x10] sm:$0xff]
        %v378 = vld [vmem:[%s348 + $0x18] sm:$0xff]
        %v379 = vld [vmem:[%s348 + $0x20] sm:$0xff]
        %v380 = vld [vmem:[%s348 + $0x28] sm:$0xff]
        %v381 = vld [vmem:[%s348 + $0x30] sm:$0xff]
        %v382 = vld [vmem:[%s348 + $0x38] sm:$0xff]
        %v383 = vld [vmem:[%s348 + $0x40] sm:$0xff]
        %v384 = vld [vmem:[%s348 + $0x48] sm:$0xff]
        %v385 = vld [vmem:[%s348 + $0x50] sm:$0xff]
        %v386 = vld [vmem:[%s348 + $0x58] sm:$0xff]
        %v387 = vld [vmem:[%s348 + $0x60] sm:$0xff]
        %v388 = vld [vmem:[%s348 + $0x68] sm:$0xff]
        %v389 = vld [vmem:[%s348 + $0x70] sm:$0xff]
        %v390 = vld [vmem:[%s348 + $0x78] sm:$0xff]
        %v391 = vld [vmem:[%s348 + $0x80] sm:$0xff]
        %v392 = vld [vmem:[%s348 + $0x88] sm:$0xff]
        %v393 = vld [vmem:[%s348 + $0x90] sm:$0xff]
        %v394 = vld [vmem:[%s348 + $0x98] sm:$0xff]
        %v395 = vld [vmem:[%s348 + $0xa0] sm:$0xff]
        %v396 = vld [vmem:[%s348 + $0xa8] sm:$0xff]
        %v397 = vld [vmem:[%s348 + $0xb0] sm:$0xff]
        %v398 = vld [vmem:[%s348 + $0xb8] sm:$0xff]
        %v399 = vld [vmem:[%s348 + $0xc0] sm:$0xff]
        %v400 = vld [vmem:[%s348 + $0xc8] sm:$0xff]
        %v401 = vld [vmem:[%s348 + $0xd0] sm:$0xff]
        %v402 = vld [vmem:[%s348 + $0xd8] sm:$0xff]
        %v403 = vld [vmem:[%s348 + $0xe0] sm:$0xff]
        %v404 = vld [vmem:[%s348 + $0xe8] sm:$0xff]
        %v405 = vld [vmem:[%s348 + $0xf0] sm:$0xff]
        %v406 = vld [vmem:[%s348 + $0xf8] sm:$0xff]
        %v407 = vld [vmem:[%s3] sm:$0xff]
        %v408 = vld [vmem:[%s3 + $0x8] sm:$0xff]
        %410 = vset.pattern.permute.xlu0 0
        %411 = vperm.xlu0 %410, %v407
        %v412 = vpop.permute.xlu0 %411
        %415 = vset.pattern.permute.xlu0 0
        %416 = vperm.xlu0 %415, %v408
        %v417 = vpop.permute.xlu0 %416
        %vm419 = vcmask 64512
        %v421 = vsel %vm419, %v373, 0
        %v424 = vsel %vm419, %v374, 0
        %v427 = vsel %vm419, %v375, 0
        %v430 = vsel %vm419, %v376, 0
        %v433 = vsel %vm419, %v377, 0
        %v436 = vsel %vm419, %v378, 0
        %v439 = vsel %vm419, %v379, 0
        %v442 = vsel %vm419, %v380, 0
        %v445 = vsel %vm419, %v381, 0
        %v448 = vsel %vm419, %v382, 0
        %v451 = vsel %vm419, %v383, 0
        %v454 = vsel %vm419, %v384, 0
        %v457 = vsel %vm419, %v385, 0
        %v460 = vsel %vm419, %v386, 0
        %v463 = vsel %vm419, %v387, 0
        %v466 = vsel %vm419, %v388, 0
        %v469 = vsel %vm419, %v389, 0
        %v472 = vsel %vm419, %v390, 0
        %v475 = vsel %vm419, %v391, 0
        %v478 = vsel %vm419, %v392, 0
        %v481 = vsel %vm419, %v393, 0
        %v484 = vsel %vm419, %v394, 0
        %v487 = vsel %vm419, %v395, 0
        %v490 = vsel %vm419, %v396, 0
        %v493 = vsel %vm419, %v397, 0
        %v496 = vsel %vm419, %v398, 0
        %v499 = vsel %vm419, %v399, 0
        %v502 = vsel %vm419, %v400, 0
        %v505 = vsel %vm419, %v401, 0
        %v508 = vsel %vm419, %v402, 0
        %v511 = vsel %vm419, %v403, 0
        %v514 = vsel %vm419, %v404, 0
        %v517 = vsel %vm419, %v405, 0
        %v520 = vsel %vm419, %v406, 0
        %522 = vmatprep.subr.mxu0 0.0
        %523 = vmatpush1.xpose.msra.mxu0 %v427
        %524 = vmatprep.subr.mxu0 0.0
        %525 = vmatpush1.xpose.msra.mxu0 %v430
        %526 = vmatprep.subr.mxu0 0.0
        %527 = vmatpush1.xpose.msra.mxu0 %v433
        %528 = vmatprep.subr.mxu0 0.0
        %529 = vmatpush1.xpose.msra.mxu0 %v436
        %530 = vmatprep.subr.mxu0 0.0
        %531 = vmatpush1.xpose.msra.mxu0 %v439
        %532 = vmatprep.subr.mxu0 0.0
        %533 = vmatpush1.xpose.msra.mxu0 %v442
        %534 = vmatprep.subr.mxu0 0.0
        %535 = vmatpush1.xpose.msra.mxu0 %v445
        %536 = vmatprep.subr.mxu0 0.0
        %537 = vmatpush1.xpose.msra.mxu0 %v448
        %538 = vmatprep.subr.mxu0 0.0
        %539 = vmatpush1.xpose.msra.mxu0 %v451
        %540 = vmatprep.subr.mxu0 0.0
        %541 = vmatpush1.xpose.msra.mxu0 %v454
        %542 = vmatprep.subr.mxu0 0.0
        %543 = vmatpush1.xpose.msra.mxu0 %v457
        %544 = vmatprep.subr.mxu0 0.0
        %545 = vmatpush1.xpose.msra.mxu0 %v460
        %546 = vmatprep.subr.mxu0 0.0
        %547 = vmatpush1.xpose.msra.mxu0 %v463
        %548 = vmatprep.subr.mxu0 0.0
        %549 = vmatpush1.xpose.msra.mxu0 %v466
        %550 = vmatprep.subr.mxu0 0.0
        %551 = vmatpush1.xpose.msra.mxu0 %v469
        %552 = vmatprep.subr.mxu0 0.0
        %553 = vmatpush1.xpose.msra.mxu0 %v472
        %554 = vmatprep.subr.mxu0 0.0
        %555 = vmatpush1.xpose.msra.mxu0 %v475
        %556 = vmatprep.subr.mxu0 0.0
        %557 = vmatpush1.xpose.msra.mxu0 %v478
        %558 = vmatprep.subr.mxu0 0.0
        %559 = vmatpush1.xpose.msra.mxu0 %v481
        %560 = vmatprep.subr.mxu0 0.0
        %561 = vmatpush1.xpose.msra.mxu0 %v484
        %562 = vmatprep.subr.mxu0 0.0
        %563 = vmatpush1.xpose.msra.mxu0 %v487
        %564 = vmatprep.subr.mxu0 0.0
        %565 = vmatpush1.xpose.msra.mxu0 %v490
        %566 = vmatprep.subr.mxu0 0.0
        %567 = vmatpush1.xpose.msra.mxu0 %v493
        %568 = vmatprep.subr.mxu0 0.0
        %569 = vmatpush1.xpose.msra.mxu0 %v496
        %570 = vmatprep.subr.mxu0 0.0
        %571 = vmatpush1.xpose.msra.mxu0 %v499
        %572 = vmatprep.subr.mxu0 0.0
        %573 = vmatpush1.xpose.msra.mxu0 %v502
        %574 = vmatprep.subr.mxu0 0.0
        %575 = vmatpush1.xpose.msra.mxu0 %v505
        %576 = vmatprep.subr.mxu0 0.0
        %577 = vmatpush1.xpose.msra.mxu0 %v508
        %578 = vmatprep.subr.mxu0 0.0
        %579 = vmatpush1.xpose.msra.mxu0 %v511
        %580 = vmatprep.subr.mxu0 0.0
        %581 = vmatpush1.xpose.msra.mxu0 %v514
        %582 = vmatprep.subr.mxu0 0.0
        %583 = vmatpush1.xpose.msra.mxu0 %v517
        %584 = vmatprep.subr.mxu0 0.0
        %585 = vmatpush1.xpose.msra.mxu0 %v520
        %586 = vmatprep.mubr.f32.mxu0 0.0
        %587 = vmatmul.mubr.f32.gmra.mrb[0].mxu0 %v421
        %v588 = vpop.f32.mrb[0].mxu0
        %v589 = vadd.f32 %v412, %v588
        %v590 = vpop.f32.mrb[0].mxu0
        %v591 = vadd.f32 %v412, %v590
        %592 = vmatprep.mubr.f32.mxu0 0.0
        %593 = vmatmul.mubr.f32.gmra.mrb[0].mxu0 %v424
        %v594 = vpop.f32.mrb[0].mxu0
        %v595 = vadd.f32 %v417, %v594
        %v596 = vpop.f32.mrb[0].mxu0
        %v597 = vadd.f32 %v417, %v596
        %598 = vdwg.mxu0
        %v599 = vmax.f32 %v589, 0.0
        %v600 = vmax.f32 %v591, 0.0
        %v601 = vmax.f32 %v595, 0.0
        %v602 = vmax.f32 %v597, 0.0
        %v603 = vld [vmem:[%s4] sm:$0xff]
        %v604 = vld [vmem:[%s4 + $0x8] sm:$0xff]
        %v605 = vld [vmem:[%s5] sm:$0xff]
        %v606 = vld [vmem:[%s5 + $0x8] sm:$0xff]
        %608 = vset.pattern.permute.xlu0 0
        %609 = vperm.xlu0 %608, %v605
        %v610 = vpop.permute.xlu0 %609
        %613 = vset.pattern.permute.xlu0 0
        %614 = vperm.xlu0 %613, %v606
        %v615 = vpop.permute.xlu0 %614
        %vm617 = vcmask 130048
        %v619 = vsel %vm617, %v603, 0
        %v622 = vsel %vm617, %v604, 0
        %624 = vmatprep.subr.mxu0 %v600
        %625 = vmatpush1.msra.mxu0 %v599
        %626 = vmatprep.subr.mxu0 %v602
        %627 = vmatpush1.msra.mxu0 %v601
        %628 = vmatprep.subr.mxu0 0.0
        %629 = vmatpush1.msra.mxu0 0.0
        %630 = vmatprep.subr.mxu0 0.0
        %631 = vmatpush1.msra.mxu0 0.0
        %632 = vmatprep.subr.mxu0 0.0
        %633 = vmatpush1.msra.mxu0 0.0
        %634 = vmatprep.subr.mxu0 0.0
        %635 = vmatpush1.msra.mxu0 0.0
        %636 = vmatprep.subr.mxu0 0.0
        %637 = vmatpush1.msra.mxu0 0.0
        %638 = vmatprep.subr.mxu0 0.0
        %639 = vmatpush1.msra.mxu0 0.0
        %640 = vmatprep.subr.mxu0 0.0
        %641 = vmatpush1.msra.mxu0 0.0
        %642 = vmatprep.subr.mxu0 0.0
        %643 = vmatpush1.msra.mxu0 0.0
        %644 = vmatprep.subr.mxu0 0.0
        %645 = vmatpush1.msra.mxu0 0.0
        %646 = vmatprep.subr.mxu0 0.0
        %647 = vmatpush1.msra.mxu0 0.0
        %648 = vmatprep.subr.mxu0 0.0
        %649 = vmatpush1.msra.mxu0 0.0
        %650 = vmatprep.subr.mxu0 0.0
        %651 = vmatpush1.msra.mxu0 0.0
        %652 = vmatprep.subr.mxu0 0.0
        %653 = vmatpush1.msra.mxu0 0.0
        %654 = vmatprep.subr.mxu0 0.0
        %655 = vmatpush1.msra.mxu0 0.0
        %656 = vmatprep.subr.mxu0 0.0
        %657 = vmatpush1.msra.mxu0 0.0
        %658 = vmatprep.subr.mxu0 0.0
        %659 = vmatpush1.msra.mxu0 0.0
        %660 = vmatprep.subr.mxu0 0.0
        %661 = vmatpush1.msra.mxu0 0.0
        %662 = vmatprep.subr.mxu0 0.0
        %663 = vmatpush1.msra.mxu0 0.0
        %664 = vmatprep.subr.mxu0 0.0
        %665 = vmatpush1.msra.mxu0 0.0
        %666 = vmatprep.subr.mxu0 0.0
        %667 = vmatpush1.msra.mxu0 0.0
        %668 = vmatprep.subr.mxu0 0.0
        %669 = vmatpush1.msra.mxu0 0.0
        %670 = vmatprep.subr.mxu0 0.0
        %671 = vmatpush1.msra.mxu0 0.0
        %672 = vmatprep.subr.mxu0 0.0
        %673 = vmatpush1.msra.mxu0 0.0
        %674 = vmatprep.subr.mxu0 0.0
        %675 = vmatpush1.msra.mxu0 0.0
        %676 = vmatprep.subr.mxu0 0.0
        %677 = vmatpush1.msra.mxu0 0.0
        %678 = vmatprep.subr.mxu0 0.0
        %679 = vmatpush1.msra.mxu0 0.0
        %680 = vmatprep.subr.mxu0 0.0
        %681 = vmatpush1.msra.mxu0 0.0
        %682 = vmatprep.subr.mxu0 0.0
        %683 = vmatpush1.msra.mxu0 0.0
        %684 = vmatprep.subr.mxu0 0.0
        %685 = vmatpush1.msra.mxu0 0.0
        %686 = vmatprep.subr.mxu0 0.0
        %687 = vmatpush1.msra.mxu0 0.0
        %688 = vmatprep.mubr.f32.mxu0 0.0
        %689 = vmatmul.mubr.f32.gmra.mrb[0].mxu0 %v619
        %v690 = vpop.f32.mrb[0].mxu0
        %v691 = vadd.f32 %v610, %v690
        %v692 = vpop.f32.mrb[0].mxu0
        %v693 = vadd.f32 %v610, %v692
        %694 = vmatprep.mubr.f32.mxu0 0.0
        %695 = vmatmul.mubr.f32.gmra.mrb[0].mxu0 %v622
        %v696 = vpop.f32.mrb[0].mxu0
        %v697 = vadd.f32 %v615, %v696
        %v698 = vpop.f32.mrb[0].mxu0
        %v699 = vadd.f32 %v615, %v698
        %700 = vdwg.mxu0
        %v701 = vmax.f32 %v691, 0.0
        %v702 = vmax.f32 %v693, 0.0
        %v703 = vmax.f32 %v697, 0.0
        %v704 = vmax.f32 %v699, 0.0
        %v705 = vld [vmem:[%s6] sm:$0xff]
        %v706 = vld [vmem:[%s7] sm:$0xff]
        %708 = vset.pattern.permute.xlu0 0
        %709 = vperm.xlu0 %708, %v706
        %v710 = vpop.permute.xlu0 %709
        %v713 = vsel %vm617, %v705, 0
        %715 = vmatprep.subr.mxu0 %v702
        %716 = vmatpush1.msra.mxu0 %v701
        %717 = vmatprep.subr.mxu0 %v704
        %718 = vmatpush1.msra.mxu0 %v703
        %719 = vmatprep.subr.mxu0 0.0
        %720 = vmatpush1.msra.mxu0 0.0
        %721 = vmatprep.subr.mxu0 0.0
        %722 = vmatpush1.msra.mxu0 0.0
        %723 = vmatprep.subr.mxu0 0.0
        %724 = vmatpush1.msra.mxu0 0.0
        %725 = vmatprep.subr.mxu0 0.0
        %726 = vmatpush1.msra.mxu0 0.0
        %727 = vmatprep.subr.mxu0 0.0
        %728 = vmatpush1.msra.mxu0 0.0
        %729 = vmatprep.subr.mxu0 0.0
        %730 = vmatpush1.msra.mxu0 0.0
        %731 = vmatprep.subr.mxu0 0.0
        %732 = vmatpush1.msra.mxu0 0.0
        %733 = vmatprep.subr.mxu0 0.0
        %734 = vmatpush1.msra.mxu0 0.0
        %735 = vmatprep.subr.mxu0 0.0
        %736 = vmatpush1.msra.mxu0 0.0
        %737 = vmatprep.subr.mxu0 0.0
        %738 = vmatpush1.msra.mxu0 0.0
        %739 = vmatprep.subr.mxu0 0.0
        %740 = vmatpush1.msra.mxu0 0.0
        %741 = vmatprep.subr.mxu0 0.0
        %742 = vmatpush1.msra.mxu0 0.0
        %743 = vmatprep.subr.mxu0 0.0
        %744 = vmatpush1.msra.mxu0 0.0
        %745 = vmatprep.subr.mxu0 0.0
        %746 = vmatpush1.msra.mxu0 0.0
        %747 = vmatprep.subr.mxu0 0.0
        %748 = vmatpush1.msra.mxu0 0.0
        %749 = vmatprep.subr.mxu0 0.0
        %750 = vmatpush1.msra.mxu0 0.0
        %751 = vmatprep.subr.mxu0 0.0
        %752 = vmatpush1.msra.mxu0 0.0
        %753 = vmatprep.subr.mxu0 0.0
        %754 = vmatpush1.msra.mxu0 0.0
        %755 = vmatprep.subr.mxu0 0.0
        %756 = vmatpush1.msra.mxu0 0.0
        %757 = vmatprep.subr.mxu0 0.0
        %758 = vmatpush1.msra.mxu0 0.0
        %759 = vmatprep.subr.mxu0 0.0
        %760 = vmatpush1.msra.mxu0 0.0
        %761 = vmatprep.subr.mxu0 0.0
        %762 = vmatpush1.msra.mxu0 0.0
        %763 = vmatprep.subr.mxu0 0.0
        %764 = vmatpush1.msra.mxu0 0.0
        %765 = vmatprep.subr.mxu0 0.0
        %766 = vmatpush1.msra.mxu0 0.0
        %767 = vmatprep.subr.mxu0 0.0
        %768 = vmatpush1.msra.mxu0 0.0
        %769 = vmatprep.subr.mxu0 0.0
        %770 = vmatpush1.msra.mxu0 0.0
        %771 = vmatprep.subr.mxu0 0.0
        %772 = vmatpush1.msra.mxu0 0.0
        %773 = vmatprep.subr.mxu0 0.0
        %774 = vmatpush1.msra.mxu0 0.0
        %775 = vmatprep.subr.mxu0 0.0
        %776 = vmatpush1.msra.mxu0 0.0
        %777 = vmatprep.subr.mxu0 0.0
        %778 = vmatpush1.msra.mxu0 0.0
        %779 = vmatprep.mubr.f32.mxu0 0.0
        %780 = vmatmul.mubr.f32.gmra.mrb[0].mxu0 %v713
        %v781 = vpop.f32.mrb[0].mxu0
        %v782 = vadd.f32 %v710, %v781
        %v783 = vpop.f32.mrb[0].mxu0
        %v784 = vadd.f32 %v710, %v783
        %785 = vdwg.mxu0
        %v786 = vtanh.pop %v782
        %v787 = vtanh.pop %v784
        %v788 = vmul.f32 %v786, 2.0
        %v789 = vmul.f32 %v787, 2.0
        %vm790 = vcmp.gt.f32.partialorder %v782, 20.0
        %vm791 = vcmp.gt.f32.partialorder %v784, 20.0
        %v792 = vmin.f32 %v782, 20.0
        %v793 = vmin.f32 %v784, 20.0
        %v794 = vmul.f32 %v792, 1.442695
        %v795 = vpow.pop %v794
        %v796 = vmul.f32 %v793, 1.442695
        %v797 = vpow.pop %v796
        %v798 = vadd.f32 %v795, 1.0
        %v799 = vlog2.pop %v798
        %v800 = vmul.f32 %v799, 0.6931472
        %v801 = vmul.f32 -0.5, %v795
        %v802 = vadd.f32 %v801, 1.0
        %v803 = vmul.f32 %v802, %v795
        %v804 = vand.u32 2147483647, %v795
        %vm805 = vcmp.lt.f32.partialorder %v804, 0.0004427343
        %v806 = vsel %vm805, %v803, %v800
        %v807 = vadd.f32 %v797, 1.0
        %v808 = vlog2.pop %v807
        %v809 = vmul.f32 %v808, 0.6931472
        %v810 = vmul.f32 -0.5, %v797
        %v811 = vadd.f32 %v810, 1.0
        %v812 = vmul.f32 %v811, %v797
        %v813 = vand.u32 2147483647, %v797
        %vm814 = vcmp.lt.f32.partialorder %v813, 0.0004427343
        %v815 = vsel %vm814, %v812, %v809
        %v816 = vsel %vm790, %v782, %v806
        %v817 = vsel %vm791, %v784, %v815
        %v818 = vlaneseq
        %v819 = vshrl.u32 %v818, 7
        %v820 = vlaneseq
        %v821 = vand.u32 %v820, 127
        %vm822 = vcmp.eq.s32.totalorder %v819, %v821
        %v823 = vsel %vm822, 1, 0
        %v824 = vcvt.s32.f32 %v823
        %v825 = vld [vmem:[%s362] sm:$0xff]
        %v826 = vld [vmem:[%s362 + $0x8] sm:$0xff]
        %v827 = vld [vmem:[%s362 + $0x10] sm:$0xff]
        %v828 = vld [vmem:[%s362 + $0x18] sm:$0xff]
        %v829 = vld [vmem:[%s362 + $0x20] sm:$0xff]
        %v830 = vld [vmem:[%s362 + $0x28] sm:$0xff]
        %v831 = vld [vmem:[%s362 + $0x30] sm:$0xff]
        %v832 = vld [vmem:[%s362 + $0x38] sm:$0xff]
        %v833 = vld [vmem:[%s362 + $0x40] sm:$0xff]
        %v834 = vld [vmem:[%s362 + $0x48] sm:$0xff]
        %v835 = vld [vmem:[%s362 + $0x50] sm:$0xff]
        %v836 = vld [vmem:[%s362 + $0x58] sm:$0xff]
        %v837 = vld [vmem:[%s362 + $0x60] sm:$0xff]
        %v838 = vld [vmem:[%s362 + $0x68] sm:$0xff]
        %v839 = vld [vmem:[%s362 + $0x70] sm:$0xff]
        %v840 = vld [vmem:[%s362 + $0x78] sm:$0xff]
        %v841 = vld [vmem:[%s362 + $0x80] sm:$0xff]
        %v842 = vld [vmem:[%s362 + $0x88] sm:$0xff]
        %v843 = vld [vmem:[%s362 + $0x90] sm:$0xff]
        %v844 = vld [vmem:[%s362 + $0x98] sm:$0xff]
        %v845 = vld [vmem:[%s362 + $0xa0] sm:$0xff]
        %v846 = vld [vmem:[%s362 + $0xa8] sm:$0xff]
        %v847 = vld [vmem:[%s362 + $0xb0] sm:$0xff]
        %v848 = vld [vmem:[%s362 + $0xb8] sm:$0xff]
        %v849 = vld [vmem:[%s362 + $0xc0] sm:$0xff]
        %v850 = vld [vmem:[%s362 + $0xc8] sm:$0xff]
        %v851 = vld [vmem:[%s362 + $0xd0] sm:$0xff]
        %v852 = vld [vmem:[%s362 + $0xd8] sm:$0xff]
        %v853 = vld [vmem:[%s362 + $0xe0] sm:$0xff]
        %v854 = vld [vmem:[%s362 + $0xe8] sm:$0xff]
        %v855 = vld [vmem:[%s362 + $0xf0] sm:$0xff]
        %v856 = vld [vmem:[%s362 + $0xf8] sm:$0xff]
        %vm857 = vcmask 31744
        %v859 = vsel %vm857, %v824, 0
        %v862 = vsel %vm857, %v825, 0
        %v865 = vsel %vm857, %v826, 0
        %v868 = vsel %vm857, %v827, 0
        %v871 = vsel %vm857, %v828, 0
        %v874 = vsel %vm857, %v829, 0
        %v877 = vsel %vm857, %v830, 0
        %v880 = vsel %vm857, %v831, 0
        %v883 = vsel %vm857, %v832, 0
        %v886 = vsel %vm857, %v833, 0
        %v889 = vsel %vm857, %v834, 0
        %v892 = vsel %vm857, %v835, 0
        %v895 = vsel %vm857, %v836, 0
        %v898 = vsel %vm857, %v837, 0
        %v901 = vsel %vm857, %v838, 0
        %v904 = vsel %vm857, %v839, 0
        %v907 = vsel %vm857, %v840, 0
        %v910 = vsel %vm857, %v841, 0
        %v913 = vsel %vm857, %v842, 0
        %v916 = vsel %vm857, %v843, 0
        %v919 = vsel %vm857, %v844, 0
        %v922 = vsel %vm857, %v845, 0
        %v925 = vsel %vm857, %v846, 0
        %v928 = vsel %vm857, %v847, 0
        %v931 = vsel %vm857, %v848, 0
        %v934 = vsel %vm857, %v849, 0
        %v937 = vsel %vm857, %v850, 0
        %v940 = vsel %vm857, %v851, 0
        %v943 = vsel %vm857, %v852, 0
        %v946 = vsel %vm857, %v853, 0
        %v949 = vsel %vm857, %v854, 0
        %v952 = vsel %vm857, %v855, 0
        %v955 = vsel %vm857, %v856, 0
        %957 = vmatprep.subr.mxu0 0.0
        %958 = vmatpush1.xpose.msra.mxu0 %v862
        %959 = vmatprep.subr.mxu0 0.0
        %960 = vmatpush1.xpose.msra.mxu0 %v865
        %961 = vmatprep.subr.mxu0 0.0
        %962 = vmatpush1.xpose.msra.mxu0 %v868
        %963 = vmatprep.subr.mxu0 0.0
        %964 = vmatpush1.xpose.msra.mxu0 %v871
        %965 = vmatprep.subr.mxu0 0.0
        %966 = vmatpush1.xpose.msra.mxu0 %v874
        %967 = vmatprep.subr.mxu0 0.0
        %968 = vmatpush1.xpose.msra.mxu0 %v877
        %969 = vmatprep.subr.mxu0 0.0
        %970 = vmatpush1.xpose.msra.mxu0 %v880
        %971 = vmatprep.subr.mxu0 0.0
        %972 = vmatpush1.xpose.msra.mxu0 %v883
        %973 = vmatprep.subr.mxu0 0.0
        %974 = vmatpush1.xpose.msra.mxu0 %v886
        %975 = vmatprep.subr.mxu0 0.0
        %976 = vmatpush1.xpose.msra.mxu0 %v889
        %977 = vmatprep.subr.mxu0 0.0
        %978 = vmatpush1.xpose.msra.mxu0 %v892
        %979 = vmatprep.subr.mxu0 0.0
        %980 = vmatpush1.xpose.msra.mxu0 %v895
        %981 = vmatprep.subr.mxu0 0.0
        %982 = vmatpush1.xpose.msra.mxu0 %v898
        %983 = vmatprep.subr.mxu0 0.0
        %984 = vmatpush1.xpose.msra.mxu0 %v901
        %985 = vmatprep.subr.mxu0 0.0
        %986 = vmatpush1.xpose.msra.mxu0 %v904
        %987 = vmatprep.subr.mxu0 0.0
        %988 = vmatpush1.xpose.msra.mxu0 %v907
        %989 = vmatprep.subr.mxu0 0.0
        %990 = vmatpush1.xpose.msra.mxu0 %v910
        %991 = vmatprep.subr.mxu0 0.0
        %992 = vmatpush1.xpose.msra.mxu0 %v913
        %993 = vmatprep.subr.mxu0 0.0
        %994 = vmatpush1.xpose.msra.mxu0 %v916
        %995 = vmatprep.subr.mxu0 0.0
        %996 = vmatpush1.xpose.msra.mxu0 %v919
        %997 = vmatprep.subr.mxu0 0.0
        %998 = vmatpush1.xpose.msra.mxu0 %v922
        %999 = vmatprep.subr.mxu0 0.0
        %1000 = vmatpush1.xpose.msra.mxu0 %v925
        %1001 = vmatprep.subr.mxu0 0.0
        %1002 = vmatpush1.xpose.msra.mxu0 %v928
        %1003 = vmatprep.subr.mxu0 0.0
        %1004 = vmatpush1.xpose.msra.mxu0 %v931
        %1005 = vmatprep.subr.mxu0 0.0
        %1006 = vmatpush1.xpose.msra.mxu0 %v934
        %1007 = vmatprep.subr.mxu0 0.0
        %1008 = vmatpush1.xpose.msra.mxu0 %v937
        %1009 = vmatprep.subr.mxu0 0.0
        %1010 = vmatpush1.xpose.msra.mxu0 %v940
        %1011 = vmatprep.subr.mxu0 0.0
        %1012 = vmatpush1.xpose.msra.mxu0 %v943
        %1013 = vmatprep.subr.mxu0 0.0
        %1014 = vmatpush1.xpose.msra.mxu0 %v946
        %1015 = vmatprep.subr.mxu0 0.0
        %1016 = vmatpush1.xpose.msra.mxu0 %v949
        %1017 = vmatprep.subr.mxu0 0.0
        %1018 = vmatpush1.xpose.msra.mxu0 %v952
        %1019 = vmatprep.subr.mxu0 0.0
        %1020 = vmatpush1.xpose.msra.mxu0 %v955
        %1021 = vmatprep.mubr.f32.mxu0 0.0
        %1022 = vmatmul.mubr.f32.gmra.mrb[0].mxu0 %v859
        %v1023 = vpop.f32.mrb[0].mxu0
        %v1024 = vadd.f32 0.0, %v1023
        %v1025 = vpop.f32.mrb[0].mxu0
        %v1026 = vadd.f32 0.0, %v1025
        %1027 = vdwg.mxu0
        %v1030 = vrot.slane %v1024, 4
        %v1031 = vrot.slane %v1026, 4
        %v1034 = vmul.f32 %v816, %v1030
        %v1035 = vmul.f32 %v817, %v1031
        %v1038 = vrot.slane %v1034, 4
        %v1039 = vrot.slane %v1035, 4
        %v1042 = vadd.f32 %v788, %v1038
        %v1043 = vadd.f32 %v789, %v1039
        %v1044 = vmax.f32 %v1042, -1.0
        %v1045 = vmax.f32 %v1043, -1.0
        %v1046 = vmin.f32 %v1044, 1.0
        %v1047 = vmin.f32 %v1045, 1.0
        %v1048 = vlog2.pop %v816
        %v1049 = vmul.f32 %v1048, 0.6931472
        %v1050 = vlog2.pop %v817
        %v1051 = vmul.f32 %v1050, 0.6931472
        %v1052 = vsub.f32 %v1046, %v788
        %v1053 = vsub.f32 %v1047, %v789
        %v1056 = vrot.slane %v816, 4
        %v1057 = vrot.slane %v817, 4
        %v1060 = vrcp.pop %v1056
        %v1061 = vmul.f32 %v1052, %v1060
        %v1062 = vrcp.pop %v1057
        %v1063 = vmul.f32 %v1053, %v1062
        %v1064 = vmul.f32 %v1061, -0.5
        %v1065 = vmul.f32 %v1063, -0.5
        %v1066 = vmul.f32 %v1064, %v1061
        %v1067 = vmul.f32 %v1065, %v1063
        %v1070 = vrot.slane %v1049, 4
        %v1071 = vrot.slane %v1051, 4
        %v1074 = vsub.f32 %v1066, %v1070
        %v1075 = vsub.f32 %v1067, %v1071
        %v1076 = vsub.f32 %v1074, 0.9189385
        %v1077 = vsub.f32 %v1075, 0.9189385
        %v1078 = vadd.f32 %v1049, 1.4189385
        %v1079 = vadd.f32 %v1051, 1.4189385
        %v1082 = vrot.slane %v1076, 4
        %v1083 = vrot.slane %v1077, 4
        %v1088 = vrot.slane %v1078, 4
        %v1089 = vrot.slane %v1079, 4
        %vm1092 = vcmask 1043456
        %v1093 = vsel %vm1092, %v1046, %v1082
        %v1094 = vsel %vm1092, %v1047, %v1083
        %1095 = vst [vmem:[%s339] sm:$0xff] %v1093
        %1096 = vst [vmem:[%s339 + $0x8] sm:$0xff] %v1094
        %1097 = vst [vmem:[%s339 + $0x10] sm:$0xf] %v1088
        %1098 = vst [vmem:[%s339 + $0x18] sm:$0xf] %v1089
        %s1099 = sand.u32 %s208, 1
        %s1100 = scalar_lea.sflag [#allocation3], %s1099
        %s1101 = sand.u32 %s208, 1
        %s1102 = smul.addr %s1101, 32
        %s1103 = scalar_lea.vmem [#allocation2], %s1102
        // Predicated region
        $region53: #{tpu_custom_call.1} parent=51 // pred_check
          %p1104 = pneg %p218
        $region54: #{tpu_custom_call.1} parent=51 // pred_check_branch
          %1106 = sbr.rel (%p1104) target = $region56
        $region55: #{tpu_custom_call.1} parent=51 // pred_region
          %s1107 = smul.u32 2, %s22
          %s1108 = ssub.s32 3, %s1107
          %p1109 = scmp.lt.s32.totalorder %s1108, 2
          %s1110 = scalar_select %p1109, %s1108, 2
          %s1111 = smul.u32 256, %s1110
          %s1113 = ssub.s32 512, %s1111
          %1114 = vsyncadd %s1100, %s1113
          %p1115 = scmp.ne.s32.totalorder 0, %s1111
          %s1116 = smul.addr %s1107, 128
          %s1117 = scalar_lea.hbm %s8, %s1116
          %s1118 = smul.u32 %s1110, 8
          %s1119 = smul.u32 %s1118, 2
          %s1120 = sshll.u32 %s1103, 4
          %s1121 = int_to_ptr.vmem [resolvable:$true] %s1120
          %s1122 = sshll.u32 %s1119, 4
          %1126 = dma.vmem_to_hbm [thread:$0]  (%p1115), %s1121, %s1122, %s1117, %s1100, 256, 384, %s1118
        $region56: #{tpu_custom_call.1} parent=51 // pred_fallthru
          _
      $region52: #{tpu_custom_call.1} parent=5 // pred_fallthru
        _
      %p1127 = scmp.le.s32.totalorder 2, %s17
      // Predicated region
      $region57: #{tpu_custom_call.1} parent=5 // pred_check
        %p1128 = pneg %p1127
      $region58: #{tpu_custom_call.1} parent=5 // pred_check_branch
        %1130 = sbr.rel (%p1128) target = $region60
      $region59: #{tpu_custom_call.1} parent=5 // pred_region
        %s1131 = ssub.s32 %s17, 2
        // Predicated region
        $region61: #{tpu_custom_call.1} parent=59 // pred_check
          %p1132 = pneg %p224
        $region62: #{tpu_custom_call.1} parent=59 // pred_check_branch
          %1134 = sbr.rel (%p1132) target = $region64
        $region63: #{tpu_custom_call.1} parent=59 // pred_region
          %s1135 = sand.u32 %s209, 1
          %s1136 = scalar_lea.sflag [#allocation3], %s1135
          %s1137 = sand.u32 %s209, 1
          %s1138 = smul.addr %s1137, 32
          %s1139 = scalar_lea.vmem [#allocation2], %s1138
          %1140 = dma.done %s1136, 512
        $region64: #{tpu_custom_call.1} parent=59 // pred_fallthru
          _
      $region60: #{tpu_custom_call.1} parent=5 // pred_fallthru
        _
    $region6: #{tpu_custom_call.1} parent=1 // loop_footer
      %s21 = sadd.s32 1, %s17
    $region7: #{tpu_custom_call.1} parent=1 // loop_footer_branch
      %16 = sbr.rel target = $region3
    $region8: #{tpu_custom_call.1} parent=1 // loop_exit
      _
    %1141 = vsyncpa [#allocation3], 1
    %s1142 = scalar_lea.sflag [#allocation3], 1
    %1143 = vsyncpa %s1142, 1

</llo_original>
